<compile_context>
chip_gen: v7x
topology: tpu7x:2x2x1
jax: 0.10.0
libtpu: 0.0.40
codegen_flags: <defaults>
</compile_context>

<pallas_src>
import functools

import jax
import jax.numpy as jnp
from jax import lax
from jax.experimental import pallas as pl
from jax.experimental.pallas import tpu as pltpu


def _round_up(x, m):
    return (x + m - 1) // m * m


def _vmem_tile_bytes(rows, cols, itemsize, nbuf=2):
    # Conservative VMEM footprint: lane dim padded to 128, sublane dim to 8,
    # double-buffered by the Pallas pipeline.
    return _round_up(rows, 8) * _round_up(cols, 128) * itemsize * nbuf


def _vmem_limit(nbytes):
    # Enough for our tiles + slack, never above v7x physical VMEM (64 MiB/TC).
    return int(min(64 << 20, max(24 << 20, nbytes + (4 << 20))))


# --------------------------------------------------------------------------
# Stage 1:  W = X @ PHI   (reduce over ingredients; K is tiny)
# grid = (recipe tiles [parallel], ingredient tiles [arbitrary, reduction])
# X arrives in its stored dtype (int8/f32/bf16) and is cast per tile.
# The ragged ingredient tail is masked in-kernel (both X cols and PHI rows,
# so garbage-from-out-of-bounds reads can never reach the accumulation).
# --------------------------------------------------------------------------
def _xphi_kernel(x_ref, phi_ref, w_ref, *, num_ingr, ti, mask_cols):
    i = pl.program_id(1)

    phi = phi_ref[...]
    cdt = phi.dtype if jnp.issubdtype(phi.dtype, jnp.floating) else jnp.float32
    x = x_ref[...].astype(cdt)      # per-tile cast: no HBM prepass over X
    phi = phi.astype(cdt)

    if mask_cols:
        base = i * ti
        col_ids = base + lax.broadcasted_iota(jnp.int32, x.shape, 1)
        x = jnp.where(col_ids < num_ingr, x, jnp.zeros_like(x))
        row_ids = base + lax.broadcasted_iota(jnp.int32, phi.shape, 0)
        phi = jnp.where(row_ids < num_ingr, phi, jnp.zeros_like(phi))

    part = lax.dot_general(x, phi, (((1,), (0,)), ((), ())),
                           preferred_element_type=jnp.float32)

    @pl.when(i == 0)
    def _():
        w_ref[...] = part            # f32 output block doubles as accumulator

    @pl.when(i > 0)
    def _():
        w_ref[...] += part


def _compute_w(X, PHI, *, w_rows, tr, ti):
    R, I = X.shape
    _, K = PHI.shape
    grid = (pl.cdiv(R, tr), pl.cdiv(I, ti))
    mask_cols = (I % ti) != 0
    kernel = functools.partial(_xphi_kernel, num_ingr=I, ti=ti,
                               mask_cols=mask_cols)

    flops = 2 * R * I * K
    bytes_accessed = int(X.size * X.dtype.itemsize                 # X streamed once
                         + PHI.size * PHI.dtype.itemsize * grid[0]  # PHI per recipe tile
                         + w_rows * K * 4)                          # W written once
    vmem = (_vmem_tile_bytes(tr, ti, X.dtype.itemsize)
            + _vmem_tile_bytes(ti, K, PHI.dtype.itemsize)
            + _vmem_tile_bytes(tr, K, 4))

    return pl.pallas_call(
        kernel,
        out_shape=jax.ShapeDtypeStruct((w_rows, K), jnp.float32),
        grid_spec=pltpu.PrefetchScalarGridSpec(
            num_scalar_prefetch=0,
            grid=grid,
            in_specs=[
                pl.BlockSpec((tr, ti), lambda r, i: (r, i)),   # X tile
                pl.BlockSpec((ti, K), lambda r, i: (i, 0)),    # PHI tile
            ],
            out_specs=pl.BlockSpec((tr, K), lambda r, i: (r, 0)),
        ),
        compiler_params=pltpu.CompilerParams(
            dimension_semantics=("parallel", "arbitrary"),
            vmem_limit_bytes=_vmem_limit(vmem)),
        cost_estimate=pl.CostEstimate(flops=flops, transcendentals=0,
                                      bytes_accessed=bytes_accessed),
    )(X, PHI)


# --------------------------------------------------------------------------
# Stage 2:  out = U @ W.T   (contract the small K axis)
# grid = (user tiles [parallel], recipe tiles [parallel]); output written once
# per tile (lane-dense when num_recipes >= 128).  W is resident in VMEM as a
# single block whenever it fits; otherwise blocked per recipe tile.
# --------------------------------------------------------------------------
def _uwt_kernel(u_ref, w_ref, o_ref, *, tn, resident):
    u = u_ref[...].astype(jnp.float32)
    if resident:
        start = pl.multiple_of(pl.program_id(1) * tn, tn)
        w = w_ref[pl.ds(start, tn), :]
    else:
        w = w_ref[...]
    o_ref[...] = lax.dot_general(
        u, w, (((1,), (1,)), ((), ())),
        preferred_element_type=jnp.float32).astype(o_ref.dtype)


def _compute_out(U, W, *, num_recipes, tm, tn, out_dtype):
    Uu, K = U.shape
    Rw, _ = W.shape
    n_m = pl.cdiv(Uu, tm)
    n_n = pl.cdiv(num_recipes, tn)

    # Resident W: whole (Rw, K) block, constant index map -> fetched once.
    resident = (n_n > 1) and (_vmem_tile_bytes(Rw, K, 4) <= (8 << 20))
    if resident:
        w_spec = pl.BlockSpec((Rw, K), lambda m, n: (0, 0))
        w_vmem = _vmem_tile_bytes(Rw, K, 4)
    else:
        w_spec = pl.BlockSpec((tn, K), lambda m, n: (n, 0))
        w_vmem = _vmem_tile_bytes(tn, K, 4)

    kernel = functools.partial(_uwt_kernel, tn=tn, resident=resident)
    out_itemsize = jnp.dtype(out_dtype).itemsize
    flops = 2 * Uu * num_recipes * K
    bytes_accessed = int(U.size * U.dtype.itemsize                      # U once (block const over n)
                         + W.size * W.dtype.itemsize * (1 if resident else n_m)
                         + Uu * num_recipes * out_itemsize)              # writeback dominates
    vmem = (_vmem_tile_bytes(tm, K, U.dtype.itemsize)
            + w_vmem
            + _vmem_tile_bytes(tm, tn, out_itemsize))

    return pl.pallas_call(
        kernel,
        out_shape=jax.ShapeDtypeStruct((Uu, num_recipes), out_dtype),
        grid_spec=pltpu.PrefetchScalarGridSpec(
            num_scalar_prefetch=0,
            grid=(n_m, n_n),
            in_specs=[pl.BlockSpec((tm, K), lambda m, n: (m, 0)), w_spec],
            out_specs=pl.BlockSpec((tm, tn), lambda m, n: (m, n)),
        ),
        compiler_params=pltpu.CompilerParams(
            dimension_semantics=("parallel", "parallel"),
            vmem_limit_bytes=_vmem_limit(vmem)),
        cost_estimate=pl.CostEstimate(flops=flops, transcendentals=0,
                                      bytes_accessed=bytes_accessed),
    )(U, W)


# --------------------------------------------------------------------------
# Public wrapper.  No padding of inputs, no de-pad slice of the output:
# the output array is exactly (num_users, num_recipes); ragged edge tiles are
# clipped on write-back and the ingredient tail is masked in-kernel.
# --------------------------------------------------------------------------
@functools.partial(jax.jit, static_argnames=("tm", "tn", "tr", "ti", "out_dtype"))
def linear_model_forward(U, PHI, X, *, tm=1024, tn=2048, tr=1024, ti=2048,
                         out_dtype=jnp.float32):
    """out = U @ PHI.T @ X.T, computed as U @ (X @ PHI).T with two Pallas kernels."""
    num_users, K = U.shape
    num_ingr, K2 = PHI.shape
    num_recipes, num_ingr2 = X.shape
    assert K == K2 and num_ingr == num_ingr2
    assert tm % 8 == 0 and tr % 8 == 0 and tn % 128 == 0 and ti % 128 == 0

    # Effective tiles: sublane dims rounded to 8, lane dims either the full
    # (small) extent or a multiple of 128 — always a legal BlockSpec shape.
    tm_eff = min(tm, _round_up(num_users, 8))
    tr_eff = min(tr, _round_up(num_recipes, 8))
    tn_eff = num_recipes if num_recipes <= tn else tn
    ti_eff = num_ingr if num_ingr <= ti else ti

    # W's recipe extent rounded up to the stage-2 recipe tile so stage-2 never
    # indexes past its end; the (tiny) pad rows only feed output columns that
    # are clipped on write-back, so they are never materialized for the user.
    w_rows = _round_up(num_recipes, tn_eff)

    W = _compute_w(X, PHI, w_rows=w_rows, tr=tr_eff, ti=ti_eff)       # (w_rows, K) f32
    return _compute_out(U, W, num_recipes=num_recipes,
                        tm=tm_eff, tn=tn_eff, out_dtype=out_dtype)

# TODO(synk): training-side pieces of the module (MSELoss, SGD optimizer) are
# host/framework logic, not part of the forward pass, and are not implemented.


if __name__ == "__main__":
    key = jax.random.PRNGKey(0)
    k_u, k_phi, k_x, k_u2, k_phi2, k_x2 = jax.random.split(key, 6)

    # ---- Test 1: small shapes (single-tile path); X kept as int8 0/1 -------
    num_users, num_ingr, num_recipes, K = 16, 32, 24, 8
    U = jax.random.uniform(k_u, (num_users, K), jnp.float32, 0.0, 0.5)
    PHI = jax.random.uniform(k_phi, (num_ingr, K), jnp.float32, 0.0, 0.5)
    X = jax.random.bernoulli(k_x, 0.2, (num_recipes, num_ingr)).astype(jnp.int8)
    Xf = X.astype(jnp.float32)

    ref = (U @ PHI.T) @ Xf.T                      # same chain as the torch module
    out = jax.block_until_ready(linear_model_forward(U, PHI, X))
    assert out.shape == (num_users, num_recipes) and out.dtype == jnp.float32
    assert jnp.allclose(out, ref, atol=1e-4, rtol=1e-4), \
        float(jnp.max(jnp.abs(out - ref)))

    out_f = jax.block_until_ready(linear_model_forward(U, PHI, Xf))
    assert jnp.allclose(out_f, ref, atol=1e-4, rtol=1e-4)

    # ---- Test 2: ragged multi-tile path (masked ingredient tail, ragged user
    #      and recipe edge tiles, resident-W dynamic slices) -----------------
    nu2, ni2, nr2 = 20, 300, 260
    U2 = jax.random.uniform(k_u2, (nu2, K), jnp.float32, 0.0, 0.5)
    PHI2 = jax.random.uniform(k_phi2, (ni2, K), jnp.float32, 0.0, 0.5)
    X2 = jax.random.bernoulli(k_x2, 0.1, (nr2, ni2)).astype(jnp.int8)
    ref2 = (U2 @ PHI2.T) @ X2.astype(jnp.float32).T
    out2 = jax.block_until_ready(
        linear_model_forward(U2, PHI2, X2, tm=16, tn=128, tr=64, ti=128))
    assert out2.shape == (nu2, nr2)
    assert jnp.allclose(out2, ref2, atol=1e-3, rtol=1e-3), \
        float(jnp.max(jnp.abs(out2 - ref2)))

    print("KERNEL_OK")
</pallas_src>

<mosaic_0001>
module attributes {stable_mosaic.version = 11 : i64} {
  func.func @_uwt_kernel(%arg0: i32, %arg1: i32, %arg2: memref<16x8xf32, #tpu.memory_space<vmem>>, %arg3: memref<24x8xf32, #tpu.memory_space<vmem>>, %arg4: memref<16x24xf32, #tpu.memory_space<vmem>>) attributes {dimension_semantics = [#tpu.dimension_semantics<parallel>, #tpu.dimension_semantics<parallel>], iteration_bounds = array<i64: 1, 1>, scalar_prefetch = 0 : i64, scratch_operands = 0 : i64, tpu.core_type = #tpu.core_type<tc>, window_params = [{transform_indices = @transform_0, window_bounds = array<i64: 16, 8>}, {transform_indices = @transform_1, window_bounds = array<i64: 24, 8>}, {transform_indices = @transform_2, window_bounds = array<i64: 16, 24>}]} {
    %c0 = arith.constant 0 : index
    %c0_0 = arith.constant 0 : index
    %0 = vector.load %arg2[%c0, %c0_0] : memref<16x8xf32, #tpu.memory_space<vmem>>, vector<16x8xf32>
    %c0_1 = arith.constant 0 : index
    %c0_2 = arith.constant 0 : index
    %1 = vector.load %arg3[%c0_1, %c0_2] : memref<24x8xf32, #tpu.memory_space<vmem>>, vector<24x8xf32>
    %cst = arith.constant dense<0.000000e+00> : vector<16x24xf32>
    %2 = tpu.matmul %0, %1, %cst {dimension_numbers = #tpu.dot_dimension_numbers<[1], [1], [0], [0], [0, 0, 1, 0], [], []>} : vector<16x8xf32>, vector<24x8xf32>, vector<16x24xf32> -> vector<16x24xf32>
    %c0_3 = arith.constant 0 : index
    %c0_4 = arith.constant 0 : index
    %3 = vector.load %arg4[%c0_3, %c0_4] : memref<16x24xf32, #tpu.memory_space<vmem>>, vector<16x24xf32>
    tpu.vector_store %arg4[%c0_3, %c0_4], %2 {strides = array<i32>} : memref<16x24xf32, #tpu.memory_space<vmem>>, vector<16x24xf32>,
    return
  }
  func.func @transform_0(%arg0: i32, %arg1: i32) -> (i32, i32) {
    %c0_i32 = arith.constant 0 : i32
    %c0_i32_0 = arith.constant 0 : i32
    return %arg0, %c0_i32 : i32, i32
  }
  func.func @transform_1(%arg0: i32, %arg1: i32) -> (i32, i32) {
    %c0_i32 = arith.constant 0 : i32
    %c0_i32_0 = arith.constant 0 : i32
    return %arg1, %c0_i32 : i32, i32
  }
  func.func @transform_2(%arg0: i32, %arg1: i32) -> (i32, i32) {
    %c0_i32 = arith.constant 0 : i32
    return %arg0, %arg1 : i32, i32
  }
}

module attributes {stable_mosaic.version = 11 : i64} {
  func.func @_xphi_kernel(%arg0: i32, %arg1: i32, %arg2: memref<24x32xi8, #tpu.memory_space<vmem>>, %arg3: memref<32x8xf32, #tpu.memory_space<vmem>>, %arg4: memref<24x8xf32, #tpu.memory_space<vmem>>) attributes {dimension_semantics = [#tpu.dimension_semantics<parallel>, #tpu.dimension_semantics<arbitrary>], iteration_bounds = array<i64: 1, 1>, scalar_prefetch = 0 : i64, scratch_operands = 0 : i64, tpu.core_type = #tpu.core_type<tc>, window_params = [{transform_indices = @transform_0, window_bounds = array<i64: 24, 32>}, {transform_indices = @transform_1, window_bounds = array<i64: 32, 8>}, {transform_indices = @transform_2, window_bounds = array<i64: 24, 8>}]} {
    %c0 = arith.constant 0 : index
    %c0_0 = arith.constant 0 : index
    %0 = vector.load %arg3[%c0, %c0_0] : memref<32x8xf32, #tpu.memory_space<vmem>>, vector<32x8xf32>
    %c0_1 = arith.constant 0 : index
    %c0_2 = arith.constant 0 : index
    %1 = vector.load %arg2[%c0_1, %c0_2] : memref<24x32xi8, #tpu.memory_space<vmem>>, vector<24x32xi8>
    %2 = arith.sitofp %1 : vector<24x32xi8> to vector<24x32xf32>
    %cst = arith.constant dense<0.000000e+00> : vector<24x8xf32>
    %3 = tpu.matmul %2, %0, %cst {dimension_numbers = #tpu.dot_dimension_numbers<[1], [0], [0], [1], [0, 0, 1, 1], [], []>} : vector<24x32xf32>, vector<32x8xf32>, vector<24x8xf32> -> vector<24x8xf32>
    %c0_i32 = arith.constant 0 : i32
    %4 = arith.cmpi eq, %arg1, %c0_i32 : i32
    %5 = arith.extui %4 : i1 to i32
    %c0_i32_3 = arith.constant 0 : i32
    %6 = arith.cmpi ne, %5, %c0_i32_3 : i32
    scf.if %6 {
      %c0_6 = arith.constant 0 : index
      %c0_7 = arith.constant 0 : index
      %10 = vector.load %arg4[%c0_6, %c0_7] : memref<24x8xf32, #tpu.memory_space<vmem>>, vector<24x8xf32>
      tpu.vector_store %arg4[%c0_6, %c0_7], %3 {strides = array<i32>} : memref<24x8xf32, #tpu.memory_space<vmem>>, vector<24x8xf32>,
    } else {
    }
    %c0_i32_4 = arith.constant 0 : i32
    %7 = arith.cmpi sgt, %arg1, %c0_i32_4 : i32
    %8 = arith.extui %7 : i1 to i32
    %c0_i32_5 = arith.constant 0 : i32
    %9 = arith.cmpi ne, %8, %c0_i32_5 : i32
    scf.if %9 {
      %c0_6 = arith.constant 0 : index
      %c0_7 = arith.constant 0 : index
      %10 = vector.load %arg4[%c0_6, %c0_7] : memref<24x8xf32, #tpu.memory_space<vmem>>, vector<24x8xf32>
      %11 = arith.addf %10, %3 : vector<24x8xf32>
      %c0_8 = arith.constant 0 : index
      %c0_9 = arith.constant 0 : index
      %12 = vector.load %arg4[%c0_8, %c0_9] : memref<24x8xf32, #tpu.memory_space<vmem>>, vector<24x8xf32>
      tpu.vector_store %arg4[%c0_8, %c0_9], %11 {strides = array<i32>} : memref<24x8xf32, #tpu.memory_space<vmem>>, vector<24x8xf32>,
    } else {
    }
    return
  }
  func.func @transform_0(%arg0: i32, %arg1: i32) -> (i32, i32) {
    %c0_i32 = arith.constant 0 : i32
    return %arg0, %arg1 : i32, i32
  }
  func.func @transform_1(%arg0: i32, %arg1: i32) -> (i32, i32) {
    %c0_i32 = arith.constant 0 : i32
    %c0_i32_0 = arith.constant 0 : i32
    return %arg1, %c0_i32 : i32, i32
  }
  func.func @transform_2(%arg0: i32, %arg1: i32) -> (i32, i32) {
    %c0_i32 = arith.constant 0 : i32
    %c0_i32_0 = arith.constant 0 : i32
    return %arg0, %c0_i32 : i32, i32
  }
}

</mosaic_0001>

<llo_original>
// kernel: linear_model_forward.3
$region0: #{linear_model_forward.3}
  #allocation0 [shape = 'u32[]', space=smem, size = 0x4, offset = 0x4, fixed_abs, tag = 'smem constant byte address 0x4 - core index']
  #allocation1 [shape = 'u32[144,128]{1,0:T(1,128)}', space=vmem, size = 0x12000, scoped, tag = 'internal scratch']
  %s0 = inlined_call_operand.vmem [shape: f32[16,8], index: 0, kind: input, shape index: {}]
  %s1 = inlined_call_operand.vmem [shape: f32[24,8], index: 1, kind: input, shape index: {}]
  %s2 = inlined_call_operand.hbm [shape: f32[16,24], index: 2, kind: output, shape index: {}]
  %s3 = sld [smem:[#allocation0]]
  $region18: #{linear_model_forward.3} parent=0
    _
  %s5 = ssub.s32 1, %s3
  %s6 = scalar_select 0, %s5, %s3
  $region1: #{linear_model_forward.3} parent=0
    #allocation2 [shape = 'u8[8192]{0}', space=vmem, size = 0x2000, scoped, tag = 'output window, operand 0, single buffered']
    #allocation3 [shape = 's32[1]{0}', space=sflag, size = 0x4, scoped, tag = 'scoped memory for linear_model_forward.3']
    %7 = vsyncpa [#allocation3], 0
    // Predicated region
    $region2: #{linear_model_forward.3} parent=1 // pred_check
      _
    $region3: #{linear_model_forward.3} parent=1 // pred_check_branch
      %9 = sbr.rel (0) target = $region5
    $region4: #{linear_model_forward.3} parent=1 // pred_region
      _
    $region5: #{linear_model_forward.3} parent=1 // pred_fallthru
      _
    // Predicated region
    $region6: #{linear_model_forward.3} parent=1 // pred_check
      _
    $region7: #{linear_model_forward.3} parent=1 // pred_check_branch
      %11 = sbr.rel (0) target = $region9
    $region8: #{linear_model_forward.3} parent=1 // pred_region
      _
    $region9: #{linear_model_forward.3} parent=1 // pred_fallthru
      _
    %v12 = vld [vmem:[%s0] sm:$0xff]
    %v13 = vld [vmem:[%s0 + $0x8] sm:$0xff]
    %v14 = vld [vmem:[%s1] sm:$0xff]
    %v15 = vld [vmem:[%s1 + $0x8] sm:$0xff]
    %v16 = vld [vmem:[%s1 + $0x10] sm:$0xff]
    %vm17 = vcmask 64512
    %v19 = vsel %vm17, %v12, 0
    %v22 = vsel %vm17, %v13, 0
    %v25 = vsel %vm17, %v14, 0
    %v28 = vsel %vm17, %v15, 0
    %v31 = vsel %vm17, %v16, 0
    %33 = vmatprep.subr.mxu0 0.0
    %34 = vmatpush1.xpose.msra.mxu0 %v25
    %35 = vmatprep.subr.mxu0 0.0
    %36 = vmatpush1.xpose.msra.mxu0 %v28
    %37 = vmatprep.subr.mxu0 0.0
    %38 = vmatpush1.xpose.msra.mxu0 %v31
    %39 = vmatprep.subr.mxu0 0.0
    %40 = vmatpush1.xpose.msra.mxu0 0.0
    %41 = vmatprep.subr.mxu0 0.0
    %42 = vmatpush1.xpose.msra.mxu0 0.0
    %43 = vmatprep.subr.mxu0 0.0
    %44 = vmatpush1.xpose.msra.mxu0 0.0
    %45 = vmatprep.subr.mxu0 0.0
    %46 = vmatpush1.xpose.msra.mxu0 0.0
    %47 = vmatprep.subr.mxu0 0.0
    %48 = vmatpush1.xpose.msra.mxu0 0.0
    %49 = vmatprep.subr.mxu0 0.0
    %50 = vmatpush1.xpose.msra.mxu0 0.0
    %51 = vmatprep.subr.mxu0 0.0
    %52 = vmatpush1.xpose.msra.mxu0 0.0
    %53 = vmatprep.subr.mxu0 0.0
    %54 = vmatpush1.xpose.msra.mxu0 0.0
    %55 = vmatprep.subr.mxu0 0.0
    %56 = vmatpush1.xpose.msra.mxu0 0.0
    %57 = vmatprep.subr.mxu0 0.0
    %58 = vmatpush1.xpose.msra.mxu0 0.0
    %59 = vmatprep.subr.mxu0 0.0
    %60 = vmatpush1.xpose.msra.mxu0 0.0
    %61 = vmatprep.subr.mxu0 0.0
    %62 = vmatpush1.xpose.msra.mxu0 0.0
    %63 = vmatprep.subr.mxu0 0.0
    %64 = vmatpush1.xpose.msra.mxu0 0.0
    %65 = vmatprep.subr.mxu0 0.0
    %66 = vmatpush1.xpose.msra.mxu0 0.0
    %67 = vmatprep.subr.mxu0 0.0
    %68 = vmatpush1.xpose.msra.mxu0 0.0
    %69 = vmatprep.subr.mxu0 0.0
    %70 = vmatpush1.xpose.msra.mxu0 0.0
    %71 = vmatprep.subr.mxu0 0.0
    %72 = vmatpush1.xpose.msra.mxu0 0.0
    %73 = vmatprep.subr.mxu0 0.0
    %74 = vmatpush1.xpose.msra.mxu0 0.0
    %75 = vmatprep.subr.mxu0 0.0
    %76 = vmatpush1.xpose.msra.mxu0 0.0
    %77 = vmatprep.subr.mxu0 0.0
    %78 = vmatpush1.xpose.msra.mxu0 0.0
    %79 = vmatprep.subr.mxu0 0.0
    %80 = vmatpush1.xpose.msra.mxu0 0.0
    %81 = vmatprep.subr.mxu0 0.0
    %82 = vmatpush1.xpose.msra.mxu0 0.0
    %83 = vmatprep.subr.mxu0 0.0
    %84 = vmatpush1.xpose.msra.mxu0 0.0
    %85 = vmatprep.subr.mxu0 0.0
    %86 = vmatpush1.xpose.msra.mxu0 0.0
    %87 = vmatprep.subr.mxu0 0.0
    %88 = vmatpush1.xpose.msra.mxu0 0.0
    %89 = vmatprep.subr.mxu0 0.0
    %90 = vmatpush1.xpose.msra.mxu0 0.0
    %91 = vmatprep.subr.mxu0 0.0
    %92 = vmatpush1.xpose.msra.mxu0 0.0
    %93 = vmatprep.subr.mxu0 0.0
    %94 = vmatpush1.xpose.msra.mxu0 0.0
    %95 = vmatprep.subr.mxu0 0.0
    %96 = vmatpush1.xpose.msra.mxu0 0.0
    %97 = vmatprep.mubr.f32.mxu0 0.0
    %98 = vmatmul.mubr.f32.gmra.mrb[0].mxu0 %v19
    %v99 = vpop.f32.mrb[0].mxu0
    %v100 = vadd.f32 0.0, %v99
    %v101 = vpop.f32.mrb[0].mxu0
    %102 = vmatprep.mubr.f32.mxu0 0.0
    %103 = vmatmul.mubr.f32.gmra.mrb[0].mxu0 %v22
    %v104 = vpop.f32.mrb[0].mxu0
    %v105 = vadd.f32 0.0, %v104
    %v106 = vpop.f32.mrb[0].mxu0
    %107 = vdwg.mxu0
    %vm108 = vcmask 195584
    %109 = vst.msk [vmem:[#allocation2] sm:$0xff] %vm108, %v100
    %110 = vst.msk [vmem:[#allocation2 + $0x8] sm:$0xff] %vm108, %v105
    // Predicated region
    $region10: #{linear_model_forward.3} parent=1 // pred_check
      _
    $region11: #{linear_model_forward.3} parent=1 // pred_check_branch
      %112 = sbr.rel (0) target = $region13
    $region12: #{linear_model_forward.3} parent=1 // pred_region
      %s114 = ssub.s32 256, 256
      %115 = vsyncadd [#allocation3], %s114
      %s116 = sshll.u32 [#allocation2], 4
      %s117 = int_to_ptr.vmem [resolvable:$true] %s116
      %122 = dma.vmem_to_hbm [thread:$0]  %s117, 256, %s2, [#allocation3], 128, 128, 8
    $region13: #{linear_model_forward.3} parent=1 // pred_fallthru
      _
    // Predicated region
    $region14: #{linear_model_forward.3} parent=1 // pred_check
      _
    $region15: #{linear_model_forward.3} parent=1 // pred_check_branch
      %124 = sbr.rel (0) target = $region17
    $region16: #{linear_model_forward.3} parent=1 // pred_region
      %125 = dma.done [#allocation3], 256
    $region17: #{linear_model_forward.3} parent=1 // pred_fallthru
      _
    %126 = vsyncpa [#allocation3], 1

// kernel: linear_model_forward.2
$region0: #{linear_model_forward.2}
  #allocation0 [shape = 'u32[]', space=smem, size = 0x4, offset = 0x4, fixed_abs, tag = 'smem constant byte address 0x4 - core index']
  #allocation1 [shape = 'u32[144,128]{1,0:T(1,128)}', space=vmem, size = 0x12000, scoped, tag = 'internal scratch']
  %s0 = inlined_call_operand.vmem [shape: s8[24,32], index: 0, kind: input, shape index: {}]
  %s1 = inlined_call_operand.vmem [shape: f32[32,8], index: 1, kind: input, shape index: {}]
  %s2 = inlined_call_operand.vmem [shape: f32[24,8], index: 2, kind: output, shape index: {}]
  %s3 = sld [smem:[#allocation0]]
  $region26: #{linear_model_forward.2} parent=0
    _
  %s5 = ssub.s32 1, %s3
  %s6 = scalar_select 0, %s5, %s3
  // Predicated region
  $region2: #{linear_model_forward.2} parent=0 // pred_check
    _
  $region3: #{linear_model_forward.2} parent=0 // pred_check_branch
    %8 = sbr.rel (0) target = $region5
  $region4: #{linear_model_forward.2} parent=0 // pred_region
    _
  $region5: #{linear_model_forward.2} parent=0 // pred_fallthru
    _
  // Predicated region
  $region6: #{linear_model_forward.2} parent=0 // pred_check
    _
  $region7: #{linear_model_forward.2} parent=0 // pred_check_branch
    %10 = sbr.rel (0) target = $region9
  $region8: #{linear_model_forward.2} parent=0 // pred_region
    _
  $region9: #{linear_model_forward.2} parent=0 // pred_fallthru
    _
  %v11 = vld [vmem:[%s1] sm:$0xff]
  %v12 = vld [vmem:[%s1 + $0x8] sm:$0xff]
  %v13 = vld [vmem:[%s1 + $0x10] sm:$0xff]
  %v14 = vld [vmem:[%s1 + $0x18] sm:$0xff]
  %v15 = vld [vmem:[%s0] sm:$0x3]
  %v16 = vld [vmem:[%s0 + $0x2] sm:$0x3]
  %v17 = vld [vmem:[%s0 + $0x4] sm:$0x3]
  %v18 = vunpack.c.0.s8 %v15
  %v19 = vunpack.c.0.s8 %v16
  %v20 = vunpack.c.0.s8 %v17
  %v21 = vcvt.s32.f32 %v18
  %v22 = vcvt.s32.f32 %v19
  %v23 = vcvt.s32.f32 %v20
  %vm24 = vcmask 261120
  %v26 = vsel %vm24, %v21, 0
  %v29 = vsel %vm24, %v22, 0
  %v32 = vsel %vm24, %v23, 0
  %34 = vmatprep.subr.mxu0 0.0
  %35 = vmatpush1.msra.mxu0 %v11
  %36 = vmatprep.subr.mxu0 0.0
  %37 = vmatpush1.msra.mxu0 %v12
  %38 = vmatprep.subr.mxu0 0.0
  %39 = vmatpush1.msra.mxu0 %v13
  %40 = vmatprep.subr.mxu0 0.0
  %41 = vmatpush1.msra.mxu0 %v14
  %42 = vmatprep.subr.mxu0 0.0
  %43 = vmatpush1.msra.mxu0 0.0
  %44 = vmatprep.subr.mxu0 0.0
  %45 = vmatpush1.msra.mxu0 0.0
  %46 = vmatprep.subr.mxu0 0.0
  %47 = vmatpush1.msra.mxu0 0.0
  %48 = vmatprep.subr.mxu0 0.0
  %49 = vmatpush1.msra.mxu0 0.0
  %50 = vmatprep.subr.mxu0 0.0
  %51 = vmatpush1.msra.mxu0 0.0
  %52 = vmatprep.subr.mxu0 0.0
  %53 = vmatpush1.msra.mxu0 0.0
  %54 = vmatprep.subr.mxu0 0.0
  %55 = vmatpush1.msra.mxu0 0.0
  %56 = vmatprep.subr.mxu0 0.0
  %57 = vmatpush1.msra.mxu0 0.0
  %58 = vmatprep.subr.mxu0 0.0
  %59 = vmatpush1.msra.mxu0 0.0
  %60 = vmatprep.subr.mxu0 0.0
  %61 = vmatpush1.msra.mxu0 0.0
  %62 = vmatprep.subr.mxu0 0.0
  %63 = vmatpush1.msra.mxu0 0.0
  %64 = vmatprep.subr.mxu0 0.0
  %65 = vmatpush1.msra.mxu0 0.0
  %66 = vmatprep.subr.mxu0 0.0
  %67 = vmatpush1.msra.mxu0 0.0
  %68 = vmatprep.subr.mxu0 0.0
  %69 = vmatpush1.msra.mxu0 0.0
  %70 = vmatprep.subr.mxu0 0.0
  %71 = vmatpush1.msra.mxu0 0.0
  %72 = vmatprep.subr.mxu0 0.0
  %73 = vmatpush1.msra.mxu0 0.0
  %74 = vmatprep.subr.mxu0 0.0
  %75 = vmatpush1.msra.mxu0 0.0
  %76 = vmatprep.subr.mxu0 0.0
  %77 = vmatpush1.msra.mxu0 0.0
  %78 = vmatprep.subr.mxu0 0.0
  %79 = vmatpush1.msra.mxu0 0.0
  %80 = vmatprep.subr.mxu0 0.0
  %81 = vmatpush1.msra.mxu0 0.0
  %82 = vmatprep.subr.mxu0 0.0
  %83 = vmatpush1.msra.mxu0 0.0
  %84 = vmatprep.subr.mxu0 0.0
  %85 = vmatpush1.msra.mxu0 0.0
  %86 = vmatprep.subr.mxu0 0.0
  %87 = vmatpush1.msra.mxu0 0.0
  %88 = vmatprep.subr.mxu0 0.0
  %89 = vmatpush1.msra.mxu0 0.0
  %90 = vmatprep.subr.mxu0 0.0
  %91 = vmatpush1.msra.mxu0 0.0
  %92 = vmatprep.subr.mxu0 0.0
  %93 = vmatpush1.msra.mxu0 0.0
  %94 = vmatprep.subr.mxu0 0.0
  %95 = vmatpush1.msra.mxu0 0.0
  %96 = vmatprep.subr.mxu0 0.0
  %97 = vmatpush1.msra.mxu0 0.0
  %98 = vmatprep.mubr.f32.mxu0 0.0
  %99 = vmatmul.mubr.f32.gmra.mrb[0].mxu0 %v26
  %v100 = vpop.f32.mrb[0].mxu0
  %v101 = vadd.f32 0.0, %v100
  %v102 = vpop.f32.mrb[0].mxu0
  %103 = vmatprep.mubr.f32.mxu0 0.0
  %104 = vmatmul.mubr.f32.gmra.mrb[0].mxu0 %v29
  %v105 = vpop.f32.mrb[0].mxu0
  %v106 = vadd.f32 0.0, %v105
  %v107 = vpop.f32.mrb[0].mxu0
  %108 = vmatprep.mubr.f32.mxu0 0.0
  %109 = vmatmul.mubr.f32.gmra.mrb[0].mxu0 %v32
  %v110 = vpop.f32.mrb[0].mxu0
  %v111 = vadd.f32 0.0, %v110
  %v112 = vpop.f32.mrb[0].mxu0
  %113 = vdwg.mxu0
  %p114 = scmp.eq.s32.totalorder 0, 0
  // Predicated region
  $region10: #{linear_model_forward.2} parent=0 // pred_check
    %p115 = pneg %p114
  $region11: #{linear_model_forward.2} parent=0 // pred_check_branch
    %117 = sbr.rel (%p115) target = $region13
  $region12: #{linear_model_forward.2} parent=0 // pred_region
    %vm118 = vcmask 64512
    %119 = vst.msk [vmem:[%s2] sm:$0xff] %vm118, %v101
    %120 = vst.msk [vmem:[%s2 + $0x8] sm:$0xff] %vm118, %v106
    %121 = vst.msk [vmem:[%s2 + $0x10] sm:$0xff] %vm118, %v111
  $region13: #{linear_model_forward.2} parent=0 // pred_fallthru
    _
  %p122 = scmp.gt.s32.totalorder 0, 0
  // Predicated region
  $region14: #{linear_model_forward.2} parent=0 // pred_check
    %p123 = pneg %p122
  $region15: #{linear_model_forward.2} parent=0 // pred_check_branch
    %125 = sbr.rel (%p123) target = $region17
  $region16: #{linear_model_forward.2} parent=0 // pred_region
    %v126 = vld [vmem:[%s2] sm:$0xff]
    %v127 = vld [vmem:[%s2 + $0x8] sm:$0xff]
    %v128 = vld [vmem:[%s2 + $0x10] sm:$0xff]
    %v129 = vadd.f32 %v126, %v101
    %v130 = vadd.f32 %v127, %v106
    %v131 = vadd.f32 %v128, %v111
    %vm132 = vcmask 64512
    %133 = vst.msk [vmem:[%s2] sm:$0xff] %vm132, %v129
    %134 = vst.msk [vmem:[%s2 + $0x8] sm:$0xff] %vm132, %v130
    %135 = vst.msk [vmem:[%s2 + $0x10] sm:$0xff] %vm132, %v131
  $region17: #{linear_model_forward.2} parent=0 // pred_fallthru
    _
  // Predicated region
  $region18: #{linear_model_forward.2} parent=0 // pred_check
    _
  $region19: #{linear_model_forward.2} parent=0 // pred_check_branch
    %137 = sbr.rel (0) target = $region21
  $region20: #{linear_model_forward.2} parent=0 // pred_region
    _
  $region21: #{linear_model_forward.2} parent=0 // pred_fallthru
    _
  // Predicated region
  $region22: #{linear_model_forward.2} parent=0 // pred_check
    _
  $region23: #{linear_model_forward.2} parent=0 // pred_check_branch
    %139 = sbr.rel (0) target = $region25
  $region24: #{linear_model_forward.2} parent=0 // pred_region
    _
  $region25: #{linear_model_forward.2} parent=0 // pred_fallthru
    _

</llo_original>
